<compile_context>
chip_gen: v5e
topology: v5e:2x2
jax: 0.10.0
libtpu: 0.0.40
codegen_flags: <defaults>
</compile_context>

<pallas_src>
import functools

import jax
import jax.numpy as jnp
from jax import lax
from jax.experimental import pallas as pl
from jax.experimental.pallas import tpu as pltpu

_SUBLANE = 8


def _round_up(a, b):
    return ((a + b - 1) // b) * b


# ----------------------------- kernels ------------------------------------


def _resblock_kernel_identity(x_ref, w0_ref, b0_ref, w1_ref, b1_ref, o_ref, *,
                              mxu_dtype):
    """One batch tile of x + fc_1(relu(fc_0(relu(x)))) (size_in == size_out)."""
    x = x_ref[...]
    h = jnp.maximum(x, 0).astype(mxu_dtype)
    net = jnp.dot(h, w0_ref[...], preferred_element_type=jnp.float32) + b0_ref[...]
    hn = jnp.maximum(net, 0.0).astype(mxu_dtype)
    dx = jnp.dot(hn, w1_ref[...], preferred_element_type=jnp.float32) + b1_ref[...]
    # Residual uses exact (up-cast) x; never routed through the MXU.
    o_ref[...] = (x.astype(jnp.float32) + dx).astype(o_ref.dtype)


def _resblock_kernel_shortcut(x_ref, w0_ref, b0_ref, w1_ref, b1_ref, ws_ref,
                              o_ref, *, mxu_dtype):
    """One batch tile of shortcut(x) + fc_1(relu(fc_0(relu(x))))."""
    x = x_ref[...]
    h = jnp.maximum(x, 0).astype(mxu_dtype)
    net = jnp.dot(h, w0_ref[...], preferred_element_type=jnp.float32) + b0_ref[...]
    hn = jnp.maximum(net, 0.0).astype(mxu_dtype)
    dx = jnp.dot(hn, w1_ref[...], preferred_element_type=jnp.float32) + b1_ref[...]
    x_s = jnp.dot(x.astype(mxu_dtype), ws_ref[...],
                  preferred_element_type=jnp.float32)
    o_ref[...] = (x_s + dx).astype(o_ref.dtype)


# ----------------------------- wrapper -------------------------------------


def _vmem_budget_bytes():
    cap = 64 * 1024 * 1024  # conservative fallback (v7x physical VMEM per TC)
    try:
        info = pltpu.get_tpu_info()
        cap = int(getattr(info, "vmem_capacity_bytes", cap))
    except Exception:
        pass
    # leave ~25% headroom for compiler scratch / spill
    return (cap * 3) // 4


def resnet_block_fc(x, params, *, tile_m_max=1024, mxu_dtype=jnp.bfloat16,
                    out_dtype=None):
    """Apply ResnetBlockFC forward via a single Pallas kernel.

    x:       (..., size_in)
    params:  dict with
      'w0': (size_in, size_h)   'b0': (size_h,)
      'w1': (size_h, size_out)  'b1': (size_out,)
      'ws': (size_in, size_out) or None   (shortcut weight, no bias)
    """
    w0, b0 = params["w0"], params["b0"]
    w1, b1 = params["w1"], params["b1"]
    ws = params["ws"]
    size_in = w0.shape[0]
    size_h = w0.shape[1]
    size_out = w1.shape[1]
    identity = ws is None
    if identity and size_in != size_out:
        raise ValueError("identity shortcut requires size_in == size_out")
    if out_dtype is None:
        out_dtype = x.dtype

    lead_shape = x.shape[:-1]
    if x.shape[-1] != size_in:
        raise ValueError("x last dim must equal size_in")
    x2 = x.reshape(-1, size_in)          # flatten leading dims (metadata only)
    N = x2.shape[0]

    # Weights resident in VMEM, pre-cast to the MXU operand dtype; biases f32.
    w0_k = w0.astype(mxu_dtype)
    w1_k = w1.astype(mxu_dtype)
    b0_k = b0.reshape(1, size_h).astype(jnp.float32)
    b1_k = b1.reshape(1, size_out).astype(jnp.float32)
    ws_k = None if identity else ws.astype(mxu_dtype)

    # ---- VMEM budgeting & batch-tile selection ----
    x_bytes = jnp.dtype(x2.dtype).itemsize
    o_bytes = jnp.dtype(out_dtype).itemsize
    w_bytes = jnp.dtype(mxu_dtype).itemsize
    weight_elems = (size_in * size_h + size_h * size_out
                    + (0 if identity else size_in * size_out))
    # x2: default double-buffering of the (constant-index) weight blocks.
    weight_bytes = 2 * (weight_elems * w_bytes + (size_h + size_out) * 4)
    # double-buffered x/out streams + live f32/mxu intermediates per row
    per_row_bytes = (2 * size_in * x_bytes + 2 * size_out * o_bytes
                     + (size_in + size_h) * (4 + w_bytes) + 2 * size_out * 4)

    budget = _vmem_budget_bytes()
    avail = budget - weight_bytes
    if avail < per_row_bytes * 4 * _SUBLANE:
        # TODO(synk): feature-dim (K/N) tiling with an f32 accumulator for
        # layers whose resident weights do not fit in VMEM.
        raise ValueError(
            f"ResnetBlockFC weights ({weight_bytes} B) leave too little VMEM "
            f"(budget {budget} B) for a sane batch tile; feature-dim tiling "
            "is not implemented.")

    rows_budget = max(_SUBLANE, (avail // per_row_bytes) // _SUBLANE * _SUBLANE)
    # >= 4 grid steps when the batch allows it (2 TCs on v7x, pipeline depth
    # on v5e/v6e); large batches stream in tile_m_max-row blocks.
    rows_for_grid = max(_SUBLANE, _round_up(pl.cdiv(N, 4), _SUBLANE))
    tile_m = max(_SUBLANE, min(int(tile_m_max), rows_budget, rows_for_grid))
    tile_m = (tile_m // _SUBLANE) * _SUBLANE
    grid = (pl.cdiv(N, tile_m),)

    # ---- cost estimate & compiler params ----
    flops = 2 * N * weight_elems
    bytes_accessed = (N * size_in * x_bytes + N * size_out * o_bytes
                      + weight_elems * w_bytes + (size_h + size_out) * 4)
    cost = pl.CostEstimate(flops=flops, transcendentals=0,
                           bytes_accessed=bytes_accessed)
    compiler_params = pltpu.CompilerParams(
        dimension_semantics=("parallel",),
        vmem_limit_bytes=int(budget))

    # ---- block specs (all feature dims are full-array-dim blocks) ----
    in_specs = [
        pl.BlockSpec((tile_m, size_in), lambda i: (i, 0)),      # x stream
        pl.BlockSpec((size_in, size_h), lambda i: (0, 0)),      # w0 (resident)
        pl.BlockSpec((1, size_h), lambda i: (0, 0)),            # b0
        pl.BlockSpec((size_h, size_out), lambda i: (0, 0)),     # w1
        pl.BlockSpec((1, size_out), lambda i: (0, 0)),          # b1
    ]
    operands = [x2, w0_k, b0_k, w1_k, b1_k]
    if identity:
        kernel_fn = _resblock_kernel_identity
    else:
        kernel_fn = _resblock_kernel_shortcut
        in_specs.append(pl.BlockSpec((size_in, size_out), lambda i: (0, 0)))
        operands.append(ws_k)

    kernel = functools.partial(kernel_fn, mxu_dtype=mxu_dtype)

    out = pl.pallas_call(
        kernel,
        out_shape=jax.ShapeDtypeStruct((N, size_out), out_dtype),
        grid_spec=pltpu.PrefetchScalarGridSpec(
            num_scalar_prefetch=0,
            grid=grid,
            in_specs=in_specs,
            out_specs=pl.BlockSpec((tile_m, size_out), lambda i: (i, 0)),
        ),
        compiler_params=compiler_params,
        cost_estimate=cost,
    )(*operands)

    return out.reshape(*lead_shape, size_out)


# ----------------------------- init / reference ----------------------------


def init_resnet_block_fc(key, size_in, size_out=None, size_h=None,
                         dtype=jnp.float32):
    """Parameter init matching the module's shapes (fc_1.weight zero-init)."""
    if size_out is None:
        size_out = size_in
    if size_h is None:
        size_h = min(size_in, size_out)
    k0, kb0, kb1, ks = jax.random.split(key, 4)
    return {
        "w0": jax.random.normal(k0, (size_in, size_h), dtype) * 0.1,
        "b0": jax.random.normal(kb0, (size_h,), dtype) * 0.1,
        "w1": jnp.zeros((size_h, size_out), dtype),     # nn.init.zeros_
        "b1": jax.random.normal(kb1, (size_out,), dtype) * 0.1,
        "ws": (None if size_in == size_out
               else jax.random.normal(ks, (size_in, size_out), dtype) * 0.1),
    }


def _reference(x, params):
    hi = lax.Precision.HIGHEST
    h = jnp.maximum(x, 0.0)
    net = jnp.dot(h, params["w0"], precision=hi) + params["b0"]
    hn = jnp.maximum(net, 0.0)
    dx = jnp.dot(hn, params["w1"], precision=hi) + params["b1"]
    x_s = x if params["ws"] is None else jnp.dot(x, params["ws"], precision=hi)
    return x_s + dx


if __name__ == "__main__":
    key = jax.random.PRNGKey(0)
    kx, kp1, kp2, kw1a, kw1b = jax.random.split(key, 5)

    # Case 1: projection shortcut (size_in != size_out), non-divisible batch.
    N, size_in, size_h, size_out = 200, 64, 48, 96
    x = jax.random.normal(kx, (N, size_in), jnp.float32)
    params = init_resnet_block_fc(kp1, size_in, size_out, size_h)
    # Give fc_1 a non-zero weight so the whole datapath is exercised.
    params["w1"] = 0.1 * jax.random.normal(kw1a, (size_h, size_out), jnp.float32)
    y_ref = _reference(x, params)

    # f32 MXU operands: faithful path, tight tolerance.
    y32 = jax.block_until_ready(resnet_block_fc(x, params, mxu_dtype=jnp.float32))
    assert y32.shape == y_ref.shape
    assert bool(jnp.allclose(y32, y_ref, atol=1e-4, rtol=1e-4))

    # Default bf16 MXU operands with f32 accumulation: relaxed tolerance.
    ybf = jax.block_until_ready(resnet_block_fc(x, params))
    assert bool(jnp.allclose(ybf, y_ref, atol=5e-2, rtol=5e-2))

    # Case 2: identity shortcut (size_in == size_out == size_h = 64).
    params2 = init_resnet_block_fc(kp2, size_in)
    params2["w1"] = 0.1 * jax.random.normal(kw1b, (size_in, size_in), jnp.float32)
    y2_ref = _reference(x, params2)
    y2 = jax.block_until_ready(resnet_block_fc(x, params2, mxu_dtype=jnp.float32))
    assert y2.shape == y2_ref.shape
    assert bool(jnp.allclose(y2, y2_ref, atol=1e-4, rtol=1e-4))
    y2bf = jax.block_until_ready(resnet_block_fc(x, params2))
    assert bool(jnp.allclose(y2bf, y2_ref, atol=5e-2, rtol=5e-2))

    print("KERNEL_OK")
</pallas_src>

<mosaic_0001>
module attributes {stable_mosaic.version = 11 : i64} {
  func.func @_resblock_kernel_shortcut(%arg0: i32, %arg1: memref<56x64xf32, #tpu.memory_space<vmem>>, %arg2: memref<64x48xf32, #tpu.memory_space<vmem>>, %arg3: memref<1x48xf32, #tpu.memory_space<vmem>>, %arg4: memref<48x96xf32, #tpu.memory_space<vmem>>, %arg5: memref<1x96xf32, #tpu.memory_space<vmem>>, %arg6: memref<64x96xf32, #tpu.memory_space<vmem>>, %arg7: memref<56x96xf32, #tpu.memory_space<vmem>>) attributes {dimension_semantics = [#tpu.dimension_semantics<parallel>], iteration_bounds = array<i64: 4>, scalar_prefetch = 0 : i64, scratch_operands = 0 : i64, tpu.core_type = #tpu.core_type<tc>, window_params = [{transform_indices = @transform_0, window_bounds = array<i64: 56, 64>}, {pipeline_mode = #tpu.pipeline_mode<synchronous>, transform_indices = @transform_1, window_bounds = array<i64: 64, 48>}, {pipeline_mode = #tpu.pipeline_mode<synchronous>, transform_indices = @transform_2, window_bounds = array<i64: 1, 48>}, {pipeline_mode = #tpu.pipeline_mode<synchronous>, transform_indices = @transform_3, window_bounds = array<i64: 48, 96>}, {pipeline_mode = #tpu.pipeline_mode<synchronous>, transform_indices = @transform_4, window_bounds = array<i64: 1, 96>}, {pipeline_mode = #tpu.pipeline_mode<synchronous>, transform_indices = @transform_5, window_bounds = array<i64: 64, 96>}, {transform_indices = @transform_6, window_bounds = array<i64: 56, 96>}]} {
    %c0 = arith.constant 0 : index
    %c0_0 = arith.constant 0 : index
    %0 = vector.load %arg1[%c0, %c0_0] : memref<56x64xf32, #tpu.memory_space<vmem>>, vector<56x64xf32>
    %cst = arith.constant 0.000000e+00 : f32
    %1 = vector.broadcast %cst : f32 to vector<56x64xf32>
    %2 = arith.maximumf %0, %1 : vector<56x64xf32>
    %c0_1 = arith.constant 0 : index
    %c0_2 = arith.constant 0 : index
    %3 = vector.load %arg2[%c0_1, %c0_2] : memref<64x48xf32, #tpu.memory_space<vmem>>, vector<64x48xf32>
    %cst_3 = arith.constant dense<0.000000e+00> : vector<56x48xf32>
    %4 = tpu.matmul %2, %3, %cst_3 {dimension_numbers = #tpu.dot_dimension_numbers<[1], [0], [0], [1], [0, 0, 1, 1], [], []>} : vector<56x64xf32>, vector<64x48xf32>, vector<56x48xf32> -> vector<56x48xf32>
    %c0_4 = arith.constant 0 : index
    %c0_5 = arith.constant 0 : index
    %5 = vector.load %arg3[%c0_4, %c0_5] : memref<1x48xf32, #tpu.memory_space<vmem>>, vector<1x48xf32>
    %6 = vector.broadcast %5 : vector<1x48xf32> to vector<56x48xf32>
    %7 = arith.addf %4, %6 : vector<56x48xf32>
    %cst_6 = arith.constant 0.000000e+00 : f32
    %8 = vector.broadcast %cst_6 : f32 to vector<56x48xf32>
    %9 = arith.maximumf %7, %8 : vector<56x48xf32>
    %c0_7 = arith.constant 0 : index
    %c0_8 = arith.constant 0 : index
    %10 = vector.load %arg4[%c0_7, %c0_8] : memref<48x96xf32, #tpu.memory_space<vmem>>, vector<48x96xf32>
    %cst_9 = arith.constant dense<0.000000e+00> : vector<56x96xf32>
    %11 = tpu.matmul %9, %10, %cst_9 {dimension_numbers = #tpu.dot_dimension_numbers<[1], [0], [0], [1], [0, 0, 1, 1], [], []>} : vector<56x48xf32>, vector<48x96xf32>, vector<56x96xf32> -> vector<56x96xf32>
    %c0_10 = arith.constant 0 : index
    %c0_11 = arith.constant 0 : index
    %12 = vector.load %arg5[%c0_10, %c0_11] : memref<1x96xf32, #tpu.memory_space<vmem>>, vector<1x96xf32>
    %13 = vector.broadcast %12 : vector<1x96xf32> to vector<56x96xf32>
    %14 = arith.addf %11, %13 : vector<56x96xf32>
    %c0_12 = arith.constant 0 : index
    %c0_13 = arith.constant 0 : index
    %15 = vector.load %arg6[%c0_12, %c0_13] : memref<64x96xf32, #tpu.memory_space<vmem>>, vector<64x96xf32>
    %cst_14 = arith.constant dense<0.000000e+00> : vector<56x96xf32>
    %16 = tpu.matmul %0, %15, %cst_14 {dimension_numbers = #tpu.dot_dimension_numbers<[1], [0], [0], [1], [0, 0, 1, 1], [], []>} : vector<56x64xf32>, vector<64x96xf32>, vector<56x96xf32> -> vector<56x96xf32>
    %17 = arith.addf %16, %14 : vector<56x96xf32>
    %c0_15 = arith.constant 0 : index
    %c0_16 = arith.constant 0 : index
    %18 = vector.load %arg7[%c0_15, %c0_16] : memref<56x96xf32, #tpu.memory_space<vmem>>, vector<56x96xf32>
    tpu.vector_store %arg7[%c0_15, %c0_16], %17 {strides = array<i32>} : memref<56x96xf32, #tpu.memory_space<vmem>>, vector<56x96xf32>,
    return
  }
  func.func @transform_0(%arg0: i32) -> (i32, i32) {
    %c0_i32 = arith.constant 0 : i32
    %c0_i32_0 = arith.constant 0 : i32
    return %arg0, %c0_i32 : i32, i32
  }
  func.func @transform_1(%arg0: i32) -> (i32, i32) {
    %c0_i32 = arith.constant 0 : i32
    %c0_i32_0 = arith.constant 0 : i32
    %c0_i32_1 = arith.constant 0 : i32
    return %c0_i32, %c0_i32_0 : i32, i32
  }
  func.func @transform_2(%arg0: i32) -> (i32, i32) {
    %c0_i32 = arith.constant 0 : i32
    %c0_i32_0 = arith.constant 0 : i32
    %c0_i32_1 = arith.constant 0 : i32
    return %c0_i32, %c0_i32_0 : i32, i32
  }
  func.func @transform_3(%arg0: i32) -> (i32, i32) {
    %c0_i32 = arith.constant 0 : i32
    %c0_i32_0 = arith.constant 0 : i32
    %c0_i32_1 = arith.constant 0 : i32
    return %c0_i32, %c0_i32_0 : i32, i32
  }
  func.func @transform_4(%arg0: i32) -> (i32, i32) {
    %c0_i32 = arith.constant 0 : i32
    %c0_i32_0 = arith.constant 0 : i32
    %c0_i32_1 = arith.constant 0 : i32
    return %c0_i32, %c0_i32_0 : i32, i32
  }
  func.func @transform_5(%arg0: i32) -> (i32, i32) {
    %c0_i32 = arith.constant 0 : i32
    %c0_i32_0 = arith.constant 0 : i32
    %c0_i32_1 = arith.constant 0 : i32
    return %c0_i32, %c0_i32_0 : i32, i32
  }
  func.func @transform_6(%arg0: i32) -> (i32, i32) {
    %c0_i32 = arith.constant 0 : i32
    %c0_i32_0 = arith.constant 0 : i32
    return %arg0, %c0_i32 : i32, i32
  }
}

</mosaic_0001>

<llo_original>
// kernel: tpu_custom_call.1
$region0: #{tpu_custom_call.1}
  #allocation0 [shape = 'u32[]', space=smem, size = 0x4, offset = 0x4, fixed_abs, tag = 'smem constant byte address 0x4 - core index']
  #allocation1 [shape = 'u32[72,128]{1,0:T(1,128)}', space=vmem, size = 0x9000, scoped, tag = 'internal scratch']
  %s0 = inlined_call_operand.vmem [shape: f32[200,64], index: 0, kind: input, shape index: {}]
  %s1 = inlined_call_operand.vmem [shape: f32[64,48], index: 1, kind: input, shape index: {}]
  %s2 = inlined_call_operand.vmem [shape: f32[1,48], index: 2, kind: input, shape index: {}]
  %s3 = inlined_call_operand.vmem [shape: f32[48,96], index: 3, kind: input, shape index: {}]
  %s4 = inlined_call_operand.vmem [shape: f32[1,96], index: 4, kind: input, shape index: {}]
  %s5 = inlined_call_operand.vmem [shape: f32[64,96], index: 5, kind: input, shape index: {}]
  %s6 = inlined_call_operand.vmem [shape: f32[200,96], index: 6, kind: output, shape index: {}]
  %s7 = sld [smem:[#allocation0]]
  $region105: #{tpu_custom_call.1} parent=0
    _
  %s9 = ssub.s32 1, %s7
  %s10 = scalar_select 0, %s9, %s7
  $region1: #{tpu_custom_call.1} parent=0
    #allocation2 [shape = 'u8[57344]{0}', space=vmem, size = 0xe000, scoped, tag = 'output window, operand 0']
    loop: start=0, step=1, limit=6
    $region2: #{tpu_custom_call.1} parent=1 // loop_pre_header
      _
    $region3: #{tpu_custom_call.1} parent=1 // loop_header
      %s12 = sphi 0, %s16
      %p13 = scmp.ge.s32.totalorder %s12, 6
      %s22 = sphi 0, %s24
      %s25 = sphi 0, %s22
      %s26 = sphi 0, %s25
      %s42 = sphi 0, %s26
      %s46 = sphi 0, %s46
      %s48 = sphi 0, %s46
      %s49 = sphi 0, %s48
      %s63 = sphi 0, %s49
      %s67 = sphi 0, %s67
      %s69 = sphi 0, %s67
      %s70 = sphi 0, %s69
      %s84 = sphi 0, %s70
      %s88 = sphi 0, %s88
      %s90 = sphi 0, %s88
      %s91 = sphi 0, %s90
      %s105 = sphi 0, %s91
      %s109 = sphi 0, %s109
      %s111 = sphi 0, %s109
      %s112 = sphi 0, %s111
      %s126 = sphi 0, %s112
      %s130 = sphi 0, %s130
      %s132 = sphi 0, %s130
      %s133 = sphi 0, %s132
      %s147 = sphi 0, %s133
      %s153 = sphi 0, %s155
      %s156 = sphi 0, %s153
      %s157 = sphi 0, %s156
      %s173 = sphi 0, %s157
    $region4: #{tpu_custom_call.1} parent=1 // loop_header_branch
      %15 = sbr.rel (%p13) target = $region8
    $region5: #{tpu_custom_call.1} parent=1 // loop_body
      %s17 = ssub.s32 %s12, 1
      %s18 = ssub.s32 %s12, 2
      %s19 = sadd.s32 %s12, 1
      %s20 = ssub.s32 %s12, %s19
      %p21 = scmp.eq.s32.totalorder %s20, 0
      %s23 = sadd.s32 %s22, 1
      %s24 = scalar_select %p21, %s22, %s23
      %p27 = pneg %p21
      %p28 = scmp.eq.s32.totalorder %s12, 3
      %p29 = por %p27, %p28
      %p30 = scmp.ne.s32.totalorder %s22, %s25
      %p31 = scmp.eq.s32.totalorder %s12, 0
      %p32 = por %p30, %p31
      %p33 = scmp.ne.s32.totalorder %s22, %s25
      %p34 = scmp.eq.s32.totalorder %s17, 3
      %p35 = por %p33, %p34
      %p36 = scmp.ne.s32.totalorder %s25, %s26
      %p37 = scmp.eq.s32.totalorder %s17, 0
      %p38 = por %p36, %p37
      %p39 = scmp.ne.s32.totalorder %s25, %s26
      %p40 = scmp.eq.s32.totalorder %s18, 3
      %p41 = por %p39, %p40
      %p43 = scmp.ne.s32.totalorder %s26, %s42
      %p44 = scmp.eq.s32.totalorder %s18, 0
      %p45 = por %p43, %p44
      %s47 = sadd.s32 %s46, 1
      %p50 = scmp.eq.s32.totalorder %s12, 3
      %p51 = scmp.ne.s32.totalorder %s46, %s48
      %p52 = scmp.eq.s32.totalorder %s12, 0
      %p53 = por %p51, %p52
      %p54 = scmp.ne.s32.totalorder %s46, %s48
      %p55 = scmp.eq.s32.totalorder %s17, 3
      %p56 = por %p54, %p55
      %p57 = scmp.ne.s32.totalorder %s48, %s49
      %p58 = scmp.eq.s32.totalorder %s17, 0
      %p59 = por %p57, %p58
      %p60 = scmp.ne.s32.totalorder %s48, %s49
      %p61 = scmp.eq.s32.totalorder %s18, 3
      %p62 = por %p60, %p61
      %p64 = scmp.ne.s32.totalorder %s49, %s63
      %p65 = scmp.eq.s32.totalorder %s18, 0
      %p66 = por %p64, %p65
      %s68 = sadd.s32 %s67, 1
      %p71 = scmp.eq.s32.totalorder %s12, 3
      %p72 = scmp.ne.s32.totalorder %s67, %s69
      %p73 = scmp.eq.s32.totalorder %s12, 0
      %p74 = por %p72, %p73
      %p75 = scmp.ne.s32.totalorder %s67, %s69
      %p76 = scmp.eq.s32.totalorder %s17, 3
      %p77 = por %p75, %p76
      %p78 = scmp.ne.s32.totalorder %s69, %s70
      %p79 = scmp.eq.s32.totalorder %s17, 0
      %p80 = por %p78, %p79
      %p81 = scmp.ne.s32.totalorder %s69, %s70
      %p82 = scmp.eq.s32.totalorder %s18, 3
      %p83 = por %p81, %p82
      %p85 = scmp.ne.s32.totalorder %s70, %s84
      %p86 = scmp.eq.s32.totalorder %s18, 0
      %p87 = por %p85, %p86
      %s89 = sadd.s32 %s88, 1
      %p92 = scmp.eq.s32.totalorder %s12, 3
      %p93 = scmp.ne.s32.totalorder %s88, %s90
      %p94 = scmp.eq.s32.totalorder %s12, 0
      %p95 = por %p93, %p94
      %p96 = scmp.ne.s32.totalorder %s88, %s90
      %p97 = scmp.eq.s32.totalorder %s17, 3
      %p98 = por %p96, %p97
      %p99 = scmp.ne.s32.totalorder %s90, %s91
      %p100 = scmp.eq.s32.totalorder %s17, 0
      %p101 = por %p99, %p100
      %p102 = scmp.ne.s32.totalorder %s90, %s91
      %p103 = scmp.eq.s32.totalorder %s18, 3
      %p104 = por %p102, %p103
      %p106 = scmp.ne.s32.totalorder %s91, %s105
      %p107 = scmp.eq.s32.totalorder %s18, 0
      %p108 = por %p106, %p107
      %s110 = sadd.s32 %s109, 1
      %p113 = scmp.eq.s32.totalorder %s12, 3
      %p114 = scmp.ne.s32.totalorder %s109, %s111
      %p115 = scmp.eq.s32.totalorder %s12, 0
      %p116 = por %p114, %p115
      %p117 = scmp.ne.s32.totalorder %s109, %s111
      %p118 = scmp.eq.s32.totalorder %s17, 3
      %p119 = por %p117, %p118
      %p120 = scmp.ne.s32.totalorder %s111, %s112
      %p121 = scmp.eq.s32.totalorder %s17, 0
      %p122 = por %p120, %p121
      %p123 = scmp.ne.s32.totalorder %s111, %s112
      %p124 = scmp.eq.s32.totalorder %s18, 3
      %p125 = por %p123, %p124
      %p127 = scmp.ne.s32.totalorder %s112, %s126
      %p128 = scmp.eq.s32.totalorder %s18, 0
      %p129 = por %p127, %p128
      %s131 = sadd.s32 %s130, 1
      %p134 = scmp.eq.s32.totalorder %s12, 3
      %p135 = scmp.ne.s32.totalorder %s130, %s132
      %p136 = scmp.eq.s32.totalorder %s12, 0
      %p137 = por %p135, %p136
      %p138 = scmp.ne.s32.totalorder %s130, %s132
      %p139 = scmp.eq.s32.totalorder %s17, 3
      %p140 = por %p138, %p139
      %p141 = scmp.ne.s32.totalorder %s132, %s133
      %p142 = scmp.eq.s32.totalorder %s17, 0
      %p143 = por %p141, %p142
      %p144 = scmp.ne.s32.totalorder %s132, %s133
      %p145 = scmp.eq.s32.totalorder %s18, 3
      %p146 = por %p144, %p145
      %p148 = scmp.ne.s32.totalorder %s133, %s147
      %p149 = scmp.eq.s32.totalorder %s18, 0
      %p150 = por %p148, %p149
      %s151 = ssub.s32 %s12, %s19
      %p152 = scmp.eq.s32.totalorder %s151, 0
      %s154 = sadd.s32 %s153, 1
      %s155 = scalar_select %p152, %s153, %s154
      %p158 = pneg %p152
      %p159 = scmp.eq.s32.totalorder %s12, 3
      %p160 = por %p158, %p159
      %p161 = scmp.ne.s32.totalorder %s153, %s156
      %p162 = scmp.eq.s32.totalorder %s12, 0
      %p163 = por %p161, %p162
      %p164 = scmp.ne.s32.totalorder %s153, %s156
      %p165 = scmp.eq.s32.totalorder %s17, 3
      %p166 = por %p164, %p165
      %p167 = scmp.ne.s32.totalorder %s156, %s157
      %p168 = scmp.eq.s32.totalorder %s17, 0
      %p169 = por %p167, %p168
      %p170 = scmp.ne.s32.totalorder %s156, %s157
      %p171 = scmp.eq.s32.totalorder %s18, 3
      %p172 = por %p170, %p171
      %p174 = scmp.ne.s32.totalorder %s157, %s173
      %p175 = scmp.eq.s32.totalorder %s18, 0
      %p176 = por %p174, %p175
      %p177 = scmp.le.s32.totalorder 1, %s12
      %p178 = scmp.lt.s32.totalorder %s12, 5
      %p179 = pnand %p177, %p178
      %p180 = pneg %p179
      // Predicated region
      $region9: #{tpu_custom_call.1} parent=5 // pred_check
        _
      $region10: #{tpu_custom_call.1} parent=5 // pred_check_branch
        %182 = sbr.rel (%p179) target = $region12
      $region11: #{tpu_custom_call.1} parent=5 // pred_region
        %s183 = ssub.s32 %s12, 1
        // Predicated region
        $region13: #{tpu_custom_call.1} parent=11 // pred_check
          %p184 = pneg %p59
        $region14: #{tpu_custom_call.1} parent=11 // pred_check_branch
          %186 = sbr.rel (%p184) target = $region16
        $region15: #{tpu_custom_call.1} parent=11 // pred_region
          _
        $region16: #{tpu_custom_call.1} parent=11 // pred_fallthru
          _
        // Predicated region
        $region17: #{tpu_custom_call.1} parent=11 // pred_check
          %p187 = pneg %p80
        $region18: #{tpu_custom_call.1} parent=11 // pred_check_branch
          %189 = sbr.rel (%p187) target = $region20
        $region19: #{tpu_custom_call.1} parent=11 // pred_region
          _
        $region20: #{tpu_custom_call.1} parent=11 // pred_fallthru
          _
        // Predicated region
        $region21: #{tpu_custom_call.1} parent=11 // pred_check
          %p190 = pneg %p101
        $region22: #{tpu_custom_call.1} parent=11 // pred_check_branch
          %192 = sbr.rel (%p190) target = $region24
        $region23: #{tpu_custom_call.1} parent=11 // pred_region
          _
        $region24: #{tpu_custom_call.1} parent=11 // pred_fallthru
          _
        // Predicated region
        $region25: #{tpu_custom_call.1} parent=11 // pred_check
          %p193 = pneg %p122
        $region26: #{tpu_custom_call.1} parent=11 // pred_check_branch
          %195 = sbr.rel (%p193) target = $region28
        $region27: #{tpu_custom_call.1} parent=11 // pred_region
          _
        $region28: #{tpu_custom_call.1} parent=11 // pred_fallthru
          _
        // Predicated region
        $region29: #{tpu_custom_call.1} parent=11 // pred_check
          %p196 = pneg %p143
        $region30: #{tpu_custom_call.1} parent=11 // pred_check_branch
          %198 = sbr.rel (%p196) target = $region32
        $region31: #{tpu_custom_call.1} parent=11 // pred_region
          _
        $region32: #{tpu_custom_call.1} parent=11 // pred_fallthru
          _
      $region12: #{tpu_custom_call.1} parent=5 // pred_fallthru
        _
      %p199 = scmp.lt.s32.totalorder %s12, 4
      // Predicated region
      $region33: #{tpu_custom_call.1} parent=5 // pred_check
        %p200 = pneg %p199
      $region34: #{tpu_custom_call.1} parent=5 // pred_check_branch
        %202 = sbr.rel (%p200) target = $region36
      $region35: #{tpu_custom_call.1} parent=5 // pred_region
        // Predicated region
        $region37: #{tpu_custom_call.1} parent=35 // pred_check
          %p203 = pneg %p32
        $region38: #{tpu_custom_call.1} parent=35 // pred_check_branch
          %205 = sbr.rel (%p203) target = $region40
        $region39: #{tpu_custom_call.1} parent=35 // pred_region
          %s206 = smul.u32 7, %s12
          %s207 = ssub.s32 25, %s206
          %p208 = scmp.lt.s32.totalorder %s207, 7
          %s209 = scalar_select %p208, %s207, 7
          %s210 = smul.u32 8, %s209
          %p211 = scmp.lt.s32.totalorder %s206, 24
          %s212 = scalar_select %p211, %s206, 24
          %s213 = smul.addr %s212, 8
          %s214 = scalar_lea.vmem %s0, %s213
          %s215 = smul.u32 7, %s12
          %s216 = ssub.s32 25, %s215
          %p217 = scmp.lt.s32.totalorder %s216, 7
          %s218 = scalar_select %p217, %s216, 7
          %s219 = smul.u32 8, %s218
        $region40: #{tpu_custom_call.1} parent=35 // pred_fallthru
          _
      $region36: #{tpu_custom_call.1} parent=5 // pred_fallthru
        _
      %p220 = scmp.le.s32.totalorder 1, %s12
      %p221 = scmp.lt.s32.totalorder %s12, 5
      %p222 = pnand %p220, %p221
      %p223 = pneg %p222
      // Predicated region
      $region41: #{tpu_custom_call.1} parent=5 // pred_check
        _
      $region42: #{tpu_custom_call.1} parent=5 // pred_check_branch
        %225 = sbr.rel (%p222) target = $region44
      $region43: #{tpu_custom_call.1} parent=5 // pred_region
        %s226 = ssub.s32 %s12, 1
        %s227 = smul.u32 7, %s17
        %s228 = ssub.s32 25, %s227
        %p229 = scmp.lt.s32.totalorder %s228, 7
        %s230 = scalar_select %p229, %s228, 7
        %s231 = smul.u32 8, %s230
        %p232 = scmp.lt.s32.totalorder %s227, 24
        %s233 = scalar_select %p232, %s227, 24
        %s234 = smul.addr %s233, 8
        %s235 = scalar_lea.vmem %s0, %s234
        %p236 = pneg %p38
        %p237 = pneg %p35
        %p238 = pneg %p59
        %p239 = pneg %p56
        %p240 = pneg %p80
        %p241 = pneg %p77
        %p242 = pneg %p101
        %p243 = pneg %p98
        %p244 = pneg %p122
        %p245 = pneg %p119
        %p246 = pneg %p143
        %p247 = pneg %p140
        %p248 = pneg %p169
        %p249 = pneg %p166
        %s250 = sand.u32 %s156, 1
        %s251 = sand.u32 %s156, 1
        %s252 = smul.addr %s251, 56
        %s253 = scalar_lea.vmem [#allocation2], %s252
        %s254 = smul.u32 7, %s17
        %s255 = ssub.s32 25, %s254
        %p256 = scmp.lt.s32.totalorder %s255, 7
        %s257 = scalar_select %p256, %s255, 7
        %s258 = smul.u32 8, %s257
        %p259 = scmp.lt.s32.totalorder %s254, 24
        %s260 = scalar_select %p259, %s254, 24
        %s261 = smul.addr %s260, 8
        %s262 = scalar_lea.vmem %s0, %s261
        %s263 = smul.u32 7, %s17
        %s264 = ssub.s32 25, %s263
        %p265 = scmp.lt.s32.totalorder %s264, 7
        %s266 = scalar_select %p265, %s264, 7
        %s267 = smul.u32 8, %s266
        %s268 = smul.u32 7, %s17
        %s269 = ssub.s32 25, %s268
        %p270 = scmp.lt.s32.totalorder %s269, 7
        %s271 = scalar_select %p270, %s269, 7
        %s272 = smul.u32 8, %s271
        %v273 = vld [vmem:[%s262] sm:$0xff]
        %v274 = vld [vmem:[%s262 + $0x8] sm:$0xff]
        %v275 = vld [vmem:[%s262 + $0x10] sm:$0xff]
        %v276 = vld [vmem:[%s262 + $0x18] sm:$0xff]
        %v277 = vld [vmem:[%s262 + $0x20] sm:$0xff]
        %v278 = vld [vmem:[%s262 + $0x28] sm:$0xff]
        %v279 = vld [vmem:[%s262 + $0x30] sm:$0xff]
        %v280 = vmax.f32 %v273, 0.0
        %v281 = vmax.f32 %v274, 0.0
        %v282 = vmax.f32 %v275, 0.0
        %v283 = vmax.f32 %v276, 0.0
        %v284 = vmax.f32 %v277, 0.0
        %v285 = vmax.f32 %v278, 0.0
        %v286 = vmax.f32 %v279, 0.0
        %v287 = vld [vmem:[%s1] sm:$0xff]
        %v288 = vld [vmem:[%s1 + $0x8] sm:$0xff]
        %v289 = vld [vmem:[%s1 + $0x10] sm:$0xff]
        %v290 = vld [vmem:[%s1 + $0x18] sm:$0xff]
        %v291 = vld [vmem:[%s1 + $0x20] sm:$0xff]
        %v292 = vld [vmem:[%s1 + $0x28] sm:$0xff]
        %v293 = vld [vmem:[%s1 + $0x30] sm:$0xff]
        %v294 = vld [vmem:[%s1 + $0x38] sm:$0xff]
        %v295 = vld [vmem:[%s2] sm:$0x1]
        %v297 = vperm.slane %v295, 0
        %vm299 = vcmask 523264
        %v301 = vsel %vm299, %v280, 0
        %v304 = vsel %vm299, %v281, 0
        %v307 = vsel %vm299, %v282, 0
        %v310 = vsel %vm299, %v283, 0
        %v313 = vsel %vm299, %v284, 0
        %v316 = vsel %vm299, %v285, 0
        %v319 = vsel %vm299, %v286, 0
        %321 = vmatpush.msra.mxu0 0.0
        %322 = vmatpush.msra.mxu0 0.0
        %323 = vmatpush.msra.mxu0 0.0
        %324 = vmatpush.msra.mxu0 0.0
        %325 = vmatpush.msra.mxu0 0.0
        %326 = vmatpush.msra.mxu0 0.0
        %327 = vmatpush.msra.mxu0 0.0
        %328 = vmatpush.msra.mxu0 0.0
        %329 = vmatpush.msra.mxu0 %v294
        %330 = vmatpush.msra.mxu0 %v293
        %331 = vmatpush.msra.mxu0 %v292
        %332 = vmatpush.msra.mxu0 %v291
        %333 = vmatpush.msra.mxu0 %v290
        %334 = vmatpush.msra.mxu0 %v289
        %335 = vmatpush.msra.mxu0 %v288
        %336 = vmatpush.msra.mxu0 %v287
        %337 = vmatmul.f32.gmra.mxu0 %v301
        %v338 = vpop.f32.mrf.mxu0
        %v339 = vadd.f32 %v297, %v338
        %340 = vmatmul.f32.gmra.mxu0 %v304
        %v341 = vpop.f32.mrf.mxu0
        %v342 = vadd.f32 %v297, %v341
        %343 = vmatmul.f32.gmra.mxu0 %v307
        %v344 = vpop.f32.mrf.mxu0
        %v345 = vadd.f32 %v297, %v344
        %346 = vmatmul.f32.gmra.mxu0 %v310
        %v347 = vpop.f32.mrf.mxu0
        %v348 = vadd.f32 %v297, %v347
        %349 = vmatmul.f32.gmra.mxu0 %v313
        %v350 = vpop.f32.mrf.mxu0
        %v351 = vadd.f32 %v297, %v350
        %352 = vmatmul.f32.gmra.mxu0 %v316
        %v353 = vpop.f32.mrf.mxu0
        %v354 = vadd.f32 %v297, %v353
        %355 = vmatmul.f32.gmra.mxu0 %v319
        %v356 = vpop.f32.mrf.mxu0
        %v357 = vadd.f32 %v297, %v356
        %358 = vdwg.mxu0
        %v359 = vmax.f32 %v339, 0.0
        %v360 = vmax.f32 %v342, 0.0
        %v361 = vmax.f32 %v345, 0.0
        %v362 = vmax.f32 %v348, 0.0
        %v363 = vmax.f32 %v351, 0.0
        %v364 = vmax.f32 %v354, 0.0
        %v365 = vmax.f32 %v357, 0.0
        %v366 = vld [vmem:[%s3] sm:$0xff]
        %v367 = vld [vmem:[%s3 + $0x8] sm:$0xff]
        %v368 = vld [vmem:[%s3 + $0x10] sm:$0xff]
        %v369 = vld [vmem:[%s3 + $0x18] sm:$0xff]
        %v370 = vld [vmem:[%s3 + $0x20] sm:$0xff]
        %v371 = vld [vmem:[%s3 + $0x28] sm:$0xff]
        %v372 = vld [vmem:[%s4] sm:$0x1]
        %v374 = vperm.slane %v372, 0
        %vm376 = vcmask 392192
        %v378 = vsel %vm376, %v359, 0
        %v381 = vsel %vm376, %v360, 0
        %v384 = vsel %vm376, %v361, 0
        %v387 = vsel %vm376, %v362, 0
        %v390 = vsel %vm376, %v363, 0
        %v393 = vsel %vm376, %v364, 0
        %v396 = vsel %vm376, %v365, 0
        %398 = vmatpush.msra.mxu0 0.0
        %399 = vmatpush.msra.mxu0 0.0
        %400 = vmatpush.msra.mxu0 0.0
        %401 = vmatpush.msra.mxu0 0.0
        %402 = vmatpush.msra.mxu0 0.0
        %403 = vmatpush.msra.mxu0 0.0
        %404 = vmatpush.msra.mxu0 0.0
        %405 = vmatpush.msra.mxu0 0.0
        %406 = vmatpush.msra.mxu0 0.0
        %407 = vmatpush.msra.mxu0 0.0
        %408 = vmatpush.msra.mxu0 %v371
        %409 = vmatpush.msra.mxu0 %v370
        %410 = vmatpush.msra.mxu0 %v369
        %411 = vmatpush.msra.mxu0 %v368
        %412 = vmatpush.msra.mxu0 %v367
        %413 = vmatpush.msra.mxu0 %v366
        %414 = vmatmul.f32.gmra.mxu0 %v378
        %v415 = vpop.f32.mrf.mxu0
        %v416 = vadd.f32 %v374, %v415
        %417 = vmatmul.f32.gmra.mxu0 %v381
        %v418 = vpop.f32.mrf.mxu0
        %v419 = vadd.f32 %v374, %v418
        %420 = vmatmul.f32.gmra.mxu0 %v384
        %v421 = vpop.f32.mrf.mxu0
        %v422 = vadd.f32 %v374, %v421
        %423 = vmatmul.f32.gmra.mxu0 %v387
        %v424 = vpop.f32.mrf.mxu0
        %v425 = vadd.f32 %v374, %v424
        %426 = vmatmul.f32.gmra.mxu0 %v390
        %v427 = vpop.f32.mrf.mxu0
        %v428 = vadd.f32 %v374, %v427
        %429 = vmatmul.f32.gmra.mxu0 %v393
        %v430 = vpop.f32.mrf.mxu0
        %v431 = vadd.f32 %v374, %v430
        %432 = vmatmul.f32.gmra.mxu0 %v396
        %v433 = vpop.f32.mrf.mxu0
        %v434 = vadd.f32 %v374, %v433
        %435 = vdwg.mxu0
        %v436 = vld [vmem:[%s5] sm:$0xff]
        %v437 = vld [vmem:[%s5 + $0x8] sm:$0xff]
        %v438 = vld [vmem:[%s5 + $0x10] sm:$0xff]
        %v439 = vld [vmem:[%s5 + $0x18] sm:$0xff]
        %v440 = vld [vmem:[%s5 + $0x20] sm:$0xff]
        %v441 = vld [vmem:[%s5 + $0x28] sm:$0xff]
        %v442 = vld [vmem:[%s5 + $0x30] sm:$0xff]
        %v443 = vld [vmem:[%s5 + $0x38] sm:$0xff]
        %v445 = vsel %vm299, %v273, 0
        %v448 = vsel %vm299, %v274, 0
        %v451 = vsel %vm299, %v275, 0
        %v454 = vsel %vm299, %v276, 0
        %v457 = vsel %vm299, %v277, 0
        %v460 = vsel %vm299, %v278, 0
        %v463 = vsel %vm299, %v279, 0
        %465 = vmatpush.msra.mxu0 0.0
        %466 = vmatpush.msra.mxu0 0.0
        %467 = vmatpush.msra.mxu0 0.0
        %468 = vmatpush.msra.mxu0 0.0
        %469 = vmatpush.msra.mxu0 0.0
        %470 = vmatpush.msra.mxu0 0.0
        %471 = vmatpush.msra.mxu0 0.0
        %472 = vmatpush.msra.mxu0 0.0
        %473 = vmatpush.msra.mxu0 %v443
        %474 = vmatpush.msra.mxu0 %v442
        %475 = vmatpush.msra.mxu0 %v441
        %476 = vmatpush.msra.mxu0 %v440
        %477 = vmatpush.msra.mxu0 %v439
        %478 = vmatpush.msra.mxu0 %v438
        %479 = vmatpush.msra.mxu0 %v437
        %480 = vmatpush.msra.mxu0 %v436
        %481 = vmatmul.f32.gmra.mxu0 %v445
        %v482 = vpop.f32.mrf.mxu0
        %v483 = vadd.f32 %v416, %v482
        %484 = vmatmul.f32.gmra.mxu0 %v448
        %v485 = vpop.f32.mrf.mxu0
        %v486 = vadd.f32 %v419, %v485
        %487 = vmatmul.f32.gmra.mxu0 %v451
        %v488 = vpop.f32.mrf.mxu0
        %v489 = vadd.f32 %v422, %v488
        %490 = vmatmul.f32.gmra.mxu0 %v454
        %v491 = vpop.f32.mrf.mxu0
        %v492 = vadd.f32 %v425, %v491
        %493 = vmatmul.f32.gmra.mxu0 %v457
        %v494 = vpop.f32.mrf.mxu0
        %v495 = vadd.f32 %v428, %v494
        %496 = vmatmul.f32.gmra.mxu0 %v460
        %v497 = vpop.f32.mrf.mxu0
        %v498 = vadd.f32 %v431, %v497
        %499 = vmatmul.f32.gmra.mxu0 %v463
        %v500 = vpop.f32.mrf.mxu0
        %v501 = vadd.f32 %v434, %v500
        %502 = vdwg.mxu0
        %vm503 = vcmask 785408
        %504 = vst.msk [vmem:[%s253] sm:$0xff] %vm503, %v483
        %505 = vst.msk [vmem:[%s253 + $0x8] sm:$0xff] %vm503, %v486
        %506 = vst.msk [vmem:[%s253 + $0x10] sm:$0xff] %vm503, %v489
        %507 = vst.msk [vmem:[%s253 + $0x18] sm:$0xff] %vm503, %v492
        %508 = vst.msk [vmem:[%s253 + $0x20] sm:$0xff] %vm503, %v495
        %509 = vst.msk [vmem:[%s253 + $0x28] sm:$0xff] %vm503, %v498
        %510 = vst.msk [vmem:[%s253 + $0x30] sm:$0xff] %vm503, %v501
        %s511 = sand.u32 %s156, 1
        %s512 = sand.u32 %s156, 1
        %s513 = smul.addr %s512, 56
        %s514 = scalar_lea.vmem [#allocation2], %s513
        // Predicated region
        $region45: #{tpu_custom_call.1} parent=43 // pred_check
          %p515 = pneg %p166
        $region46: #{tpu_custom_call.1} parent=43 // pred_check_branch
          %517 = sbr.rel (%p515) target = $region48
        $region47: #{tpu_custom_call.1} parent=43 // pred_region
          %s518 = smul.u32 7, %s17
          %s519 = ssub.s32 25, %s518
          %p520 = scmp.lt.s32.totalorder %s519, 7
          %s521 = scalar_select %p520, %s519, 7
          %s522 = smul.u32 8, %s521
          %p523 = scmp.ne.s32.totalorder 0, %s522
          %s524 = smul.addr %s518, 8
          %s525 = scalar_lea.vmem %s6, %s524
          // Predicated region
          $region49: #{tpu_custom_call.1} parent=47 // pred_check
            %p526 = pneg %p523
          $region50: #{tpu_custom_call.1} parent=47 // pred_check_branch
            %528 = sbr.rel (%p526) target = $region52
          $region51: #{tpu_custom_call.1} parent=47 // pred_region
            // Predicated region
            $region53: #{tpu_custom_call.1} parent=51 // pred_check
              _
            $region54: #{tpu_custom_call.1} parent=51 // pred_check_branch
              %530 = sbr.rel (0) target = $region56
            $region55: #{tpu_custom_call.1} parent=51 // pred_region
              // Predicated region
              $region75: #{tpu_custom_call.1} parent=55 // pred_check
                _
              $region76: #{tpu_custom_call.1} parent=55 // pred_check_branch
                %593 = sbr.rel (0) target = $region78
              $region77: #{tpu_custom_call.1} parent=55 // pred_region
                %s594 = sdiv.u32.pop %s521, 7
                %s595 = srem.u32.pop %s521, 7
                // While loop
                $region79: #{tpu_custom_call.1} parent=77 // loop_pre_header
                  _
                $region80: #{tpu_custom_call.1} parent=77 // loop_header
                  %s597 = sphi 0, %s599
                  %p598 = scmp.ge.s32.totalorder %s597, %s594
                  %s602 = sphi 0, %s621
                  %s603 = sphi %s514, %s624
                  %s604 = sphi %s525, %s625
                $region81: #{tpu_custom_call.1} parent=77 // loop_header_branch
                  %601 = sbr.rel (%p598) target = $region85
                $region82: #{tpu_custom_call.1} parent=77 // loop_body
                  %v605 = vld [vmem:[%s603] sm:$0xff]
                  %606 = vst [vmem:[%s604] sm:$0xff] %v605
                  %v607 = vld [vmem:[%s603 + $0x8] sm:$0xff]
                  %608 = vst [vmem:[%s604 + $0x8] sm:$0xff] %v607
                  %v609 = vld [vmem:[%s603 + $0x10] sm:$0xff]
                  %610 = vst [vmem:[%s604 + $0x10] sm:$0xff] %v609
                  %v611 = vld [vmem:[%s603 + $0x18] sm:$0xff]
                  %612 = vst [vmem:[%s604 + $0x18] sm:$0xff] %v611
                  %v613 = vld [vmem:[%s603 + $0x20] sm:$0xff]
                  %614 = vst [vmem:[%s604 + $0x20] sm:$0xff] %v613
                  %v615 = vld [vmem:[%s603 + $0x28] sm:$0xff]
                  %616 = vst [vmem:[%s604 + $0x28] sm:$0xff] %v615
                  %v617 = vld [vmem:[%s603 + $0x30] sm:$0xff]
                  %618 = vst [vmem:[%s604 + $0x30] sm:$0xff] %v617
                  %s619 = sadd.s32 1, %s602
                  %p620 = scmp.ge.s32.totalorder %s619, %s594
                  %s621 = scalar_select %p620, 0, %s619
                  %s622 = smul.u32 %s621, 56
                  %s623 = smul.u32 %s621, 56
                  %s624 = scalar_lea.vmem %s514, %s622 [#allocation2]
                  %s625 = scalar_lea.vmem %s525, %s623
                $region83: #{tpu_custom_call.1} parent=77 // loop_footer
                  %s599 = sadd.s32 %s597, 1
                $region84: #{tpu_custom_call.1} parent=77 // loop_footer_branch
                  %596 = sbr.rel target = $region80
                $region85: #{tpu_custom_call.1} parent=77 // loop_exit
                  _
                %s626 = sdiv.u32.pop %s521, 7
                %s627 = srem.u32.pop %s521, 7
                %s628 = smul.u32 %s626, 7
                %s629 = smul.u32 8, %s628
                %s630 = scalar_lea.vmem %s514, %s629 [#allocation2]
                %s631 = smul.u32 8, %s628
                %s632 = scalar_lea.vmem %s525, %s631
                // While loop
                $region86: #{tpu_custom_call.1} parent=77 // loop_pre_header
                  _
                $region87: #{tpu_custom_call.1} parent=77 // loop_header
                  %s634 = sphi 0, %s636
                  %p635 = scmp.ge.s32.totalorder %s634, %s627
                  %s639 = sphi 0, %s646
                  %s640 = sphi %s630, %s649
                  %s641 = sphi %s632, %s650
                $region88: #{tpu_custom_call.1} parent=77 // loop_header_branch
                  %638 = sbr.rel (%p635) target = $region92
                $region89: #{tpu_custom_call.1} parent=77 // loop_body
                  %v642 = vld [vmem:[%s640] sm:$0xff]
                  %643 = vst [vmem:[%s641] sm:$0xff] %v642
                  %s644 = sadd.s32 1, %s639
                  %p645 = scmp.ge.s32.totalorder %s644, %s627
                  %s646 = scalar_select %p645, 0, %s644
                  %s647 = smul.u32 %s646, 8
                  %s648 = smul.u32 %s646, 8
                  %s649 = scalar_lea.vmem %s630, %s647 [#allocation2]
                  %s650 = scalar_lea.vmem %s632, %s648
                $region90: #{tpu_custom_call.1} parent=77 // loop_footer
                  %s636 = sadd.s32 %s634, 1
                $region91: #{tpu_custom_call.1} parent=77 // loop_footer_branch
                  %633 = sbr.rel target = $region87
                $region92: #{tpu_custom_call.1} parent=77 // loop_exit
                  _
              $region78: #{tpu_custom_call.1} parent=55 // pred_fallthru
                _
              // Predicated region
              $region93: #{tpu_custom_call.1} parent=55 // pred_check
                _
              $region94: #{tpu_custom_call.1} parent=55 // pred_check_branch
                %652 = sbr.rel target = $region96
              $region95: #{tpu_custom_call.1} parent=55 // pred_region
                _
              $region96: #{tpu_custom_call.1} parent=55 // pred_fallthru
                _
            $region56: #{tpu_custom_call.1} parent=51 // pred_fallthru
              _
            // Predicated region
            $region57: #{tpu_custom_call.1} parent=51 // pred_check
              _
            $region58: #{tpu_custom_call.1} parent=51 // pred_check_branch
              %532 = sbr.rel target = $region60
            $region59: #{tpu_custom_call.1} parent=51 // pred_region
              %s534 = ssub.s32 256, 1
              %s535 = sdiv.u32.pop %s521, 7
              %s536 = srem.u32.pop %s521, 7
              // While loop
              $region61: #{tpu_custom_call.1} parent=59 // loop_pre_header
                _
              $region62: #{tpu_custom_call.1} parent=59 // loop_header
                %s538 = sphi 0, %s540
                %p539 = scmp.ge.s32.totalorder %s538, %s535
                %s543 = sphi 0, %s562
                %s544 = sphi %s514, %s565
                %s545 = sphi %s525, %s566
              $region63: #{tpu_custom_call.1} parent=59 // loop_header_branch
                %542 = sbr.rel (%p539) target = $region67
              $region64: #{tpu_custom_call.1} parent=59 // loop_body
                %v546 = vld [vmem:[%s544] sm:%s534]
                %547 = vst [vmem:[%s545] sm:%s534] %v546
                %v548 = vld [vmem:[%s544 + $0x8] sm:%s534]
                %549 = vst [vmem:[%s545 + $0x8] sm:%s534] %v548
                %v550 = vld [vmem:[%s544 + $0x10] sm:%s534]
                %551 = vst [vmem:[%s545 + $0x10] sm:%s534] %v550
                %v552 = vld [vmem:[%s544 + $0x18] sm:%s534]
                %553 = vst [vmem:[%s545 + $0x18] sm:%s534] %v552
                %v554 = vld [vmem:[%s544 + $0x20] sm:%s534]
                %555 = vst [vmem:[%s545 + $0x20] sm:%s534] %v554
                %v556 = vld [vmem:[%s544 + $0x28] sm:%s534]
                %557 = vst [vmem:[%s545 + $0x28] sm:%s534] %v556
                %v558 = vld [vmem:[%s544 + $0x30] sm:%s534]
                %559 = vst [vmem:[%s545 + $0x30] sm:%s534] %v558
                %s560 = sadd.s32 1, %s543
                %p561 = scmp.ge.s32.totalorder %s560, %s535
                %s562 = scalar_select %p561, 0, %s560
                %s563 = smul.u32 %s562, 56
                %s564 = smul.u32 %s562, 56
                %s565 = scalar_lea.vmem %s514, %s563 [#allocation2]
                %s566 = scalar_lea.vmem %s525, %s564
              $region65: #{tpu_custom_call.1} parent=59 // loop_footer
                %s540 = sadd.s32 %s538, 1
              $region66: #{tpu_custom_call.1} parent=59 // loop_footer_branch
                %537 = sbr.rel target = $region62
              $region67: #{tpu_custom_call.1} parent=59 // loop_exit
                _
              %s567 = sdiv.u32.pop %s521, 7
              %s568 = srem.u32.pop %s521, 7
              %s569 = smul.u32 %s567, 7
              %s570 = smul.u32 8, %s569
              %s571 = scalar_lea.vmem %s514, %s570 [#allocation2]
              %s572 = smul.u32 8, %s569
              %s573 = scalar_lea.vmem %s525, %s572
              // While loop
              $region68: #{tpu_custom_call.1} parent=59 // loop_pre_header
                _
              $region69: #{tpu_custom_call.1} parent=59 // loop_header
                %s575 = sphi 0, %s577
                %p576 = scmp.ge.s32.totalorder %s575, %s568
                %s580 = sphi 0, %s587
                %s581 = sphi %s571, %s590
                %s582 = sphi %s573, %s591
              $region70: #{tpu_custom_call.1} parent=59 // loop_header_branch
                %579 = sbr.rel (%p576) target = $region74
              $region71: #{tpu_custom_call.1} parent=59 // loop_body
                %v583 = vld [vmem:[%s581] sm:%s534]
                %584 = vst [vmem:[%s582] sm:%s534] %v583
                %s585 = sadd.s32 1, %s580
                %p586 = scmp.ge.s32.totalorder %s585, %s568
                %s587 = scalar_select %p586, 0, %s585
                %s588 = smul.u32 %s587, 8
                %s589 = smul.u32 %s587, 8
                %s590 = scalar_lea.vmem %s571, %s588 [#allocation2]
                %s591 = scalar_lea.vmem %s573, %s589
              $region72: #{tpu_custom_call.1} parent=59 // loop_footer
                %s577 = sadd.s32 %s575, 1
              $region73: #{tpu_custom_call.1} parent=59 // loop_footer_branch
                %574 = sbr.rel target = $region69
              $region74: #{tpu_custom_call.1} parent=59 // loop_exit
                _
            $region60: #{tpu_custom_call.1} parent=51 // pred_fallthru
              _
          $region52: #{tpu_custom_call.1} parent=47 // pred_fallthru
            _
          %653 = vnop
        $region48: #{tpu_custom_call.1} parent=43 // pred_fallthru
          _
      $region44: #{tpu_custom_call.1} parent=5 // pred_fallthru
        _
      %p654 = scmp.le.s32.totalorder 2, %s12
      // Predicated region
      $region97: #{tpu_custom_call.1} parent=5 // pred_check
        %p655 = pneg %p654
      $region98: #{tpu_custom_call.1} parent=5 // pred_check_branch
        %657 = sbr.rel (%p655) target = $region100
      $region99: #{tpu_custom_call.1} parent=5 // pred_region
        %s658 = ssub.s32 %s12, 2
        // Predicated region
        $region101: #{tpu_custom_call.1} parent=99 // pred_check
          %p659 = pneg %p172
        $region102: #{tpu_custom_call.1} parent=99 // pred_check_branch
          %661 = sbr.rel (%p659) target = $region104
        $region103: #{tpu_custom_call.1} parent=99 // pred_region
          %s662 = sand.u32 %s157, 1
          %s663 = sand.u32 %s157, 1
          %s664 = smul.addr %s663, 56
          %s665 = scalar_lea.vmem [#allocation2], %s664
        $region104: #{tpu_custom_call.1} parent=99 // pred_fallthru
          _
      $region100: #{tpu_custom_call.1} parent=5 // pred_fallthru
        _
    $region6: #{tpu_custom_call.1} parent=1 // loop_footer
      %s16 = sadd.s32 1, %s12
    $region7: #{tpu_custom_call.1} parent=1 // loop_footer_branch
      %11 = sbr.rel target = $region3
    $region8: #{tpu_custom_call.1} parent=1 // loop_exit
      _

</llo_original>
